<compile_context>
chip_gen: v6e
topology: v6e:2x2x1
jax: 0.10.0
libtpu: 0.0.40
codegen_flags: <defaults>
</compile_context>

<pallas_src>
import jax
import jax.numpy as jnp
from jax.experimental import pallas as pl
from jax.experimental.pallas import tpu as pltpu

# Module hyper-parameters (PyTorch module defaults).
EMBED_SIZE = 100
NUM_HIDDEN = 10
NUM_USERS = 50
NUM_LIKES = 60
BATCH = 8

# Hardware-aligned padded sizes.
H_PAD = 128                      # hidden lanes (10 -> 128), also output lanes
BIAS_LANE = 127                  # "ones" lane carrying b2 through fc2
B_BLOCK = 8                      # rows per grid step (one sublane group)


def _round_up(n, m):
    return ((n + m - 1) // m) * m


N_USERS_PAD = _round_up(NUM_USERS, 128)   # 128: one-hot K fills a vreg / MXU pass
N_LIKES_PAD = _round_up(NUM_LIKES, 128)   # 128


def _collab_fused_kernel(u_idx_ref, v_idx_ref,            # (B_BLOCK, 1) int32 VMEM
                         user_fc1_ref, like_fc1_ref,      # (N_PAD, 128) f32, fc1-folded
                         w2_ref,                          # (1, 128) f32, b2 folded
                         o_ref):                          # (B_BLOCK, 128) f32 out slab
    """Fused: one-hot gather (== fc1) -> add -> relu -> fc2 -> lane-dense store."""
    u_idx = u_idx_ref[...]                                 # (B_BLOCK, 1)
    v_idx = v_idx_ref[...]

    iota_u = jax.lax.broadcasted_iota(jnp.int32, (B_BLOCK, N_USERS_PAD), 1)
    iota_v = jax.lax.broadcasted_iota(jnp.int32, (B_BLOCK, N_LIKES_PAD), 1)
    onehot_u = (iota_u == u_idx).astype(jnp.float32)       # (B_BLOCK, 128)
    onehot_v = (iota_v == v_idx).astype(jnp.float32)

    # Gather + fc1 in one shot: tables already hold relu(emb) @ W1^T (+ b1 /
    # ones lane on the user side).  Selection by 0/1 one-hot is exact.
    h = jnp.dot(onehot_u, user_fc1_ref[...], preferred_element_type=jnp.float32)
    h = h + jnp.dot(onehot_v, like_fc1_ref[...], preferred_element_type=jnp.float32)
    # TODO(synk): nn.Dropout(0.1) is identity in eval mode; the training-mode
    # PyTorch RNG mask is not reproduced here (it would also break the
    # ones-lane bias folding).
    h = jnp.maximum(h, 0.0)           # relu(fc1); lane BIAS_LANE stays 1.0

    # fc2 as VPU multiply + lane reduction; w2_row lane BIAS_LANE carries b2.
    o = jnp.sum(h * w2_ref[...], axis=-1, keepdims=True)   # (B_BLOCK, 1)

    # Lane-dense unmasked store; the wrapper reads lane 0 inside the same jit.
    o_ref[...] = jnp.broadcast_to(o, o_ref.shape)


def init_params(key):
    """Deterministic parameter init matching the PyTorch module's shapes."""
    k = jax.random.split(key, 6)
    return {
        # nn.Embedding(num_users, embed_size)
        "user_emb": jax.random.normal(k[0], (NUM_USERS, EMBED_SIZE), jnp.float32),
        # nn.Embedding(num_likes, embed_size)
        "like_emb": jax.random.normal(k[1], (NUM_LIKES, EMBED_SIZE), jnp.float32),
        # nn.Linear(2*embed_size, num_hidden): weight (out, in), bias (out,)
        "fc1_w": jax.random.normal(k[2], (NUM_HIDDEN, 2 * EMBED_SIZE), jnp.float32) * 0.05,
        "fc1_b": jax.random.normal(k[3], (NUM_HIDDEN,), jnp.float32) * 0.05,
        # nn.Linear(num_hidden, 1)
        "fc2_w": jax.random.normal(k[4], (1, NUM_HIDDEN), jnp.float32) * 0.1,
        "fc2_b": jax.random.normal(k[5], (1,), jnp.float32) * 0.1,
    }


def prepack_params(params):
    """One-time re-layout: fold relu + fc1 (+ b1) into the tables, b2 into w2.

    Padded rows/lanes are exactly zero, so the padded math equals the reference.
    """
    E, H = EMBED_SIZE, NUM_HIDDEN
    hp = jax.lax.Precision.HIGHEST

    w1 = params["fc1_w"]                              # (H, 2E) PyTorch layout
    w1_u, w1_v = w1[:, :E], w1[:, E:]                 # (H, E) each

    # relu(emb) @ W1^T  — ReLU commutes with row selection, so gathering a row
    # of these products equals relu(gathered_emb) @ W1^T.
    user_fc1 = jnp.dot(jax.nn.relu(params["user_emb"]), w1_u.T, precision=hp)
    user_fc1 = user_fc1 + params["fc1_b"]             # fold b1 into the user side
    like_fc1 = jnp.dot(jax.nn.relu(params["like_emb"]), w1_v.T, precision=hp)

    user_tab = jnp.zeros((N_USERS_PAD, H_PAD), jnp.float32)
    user_tab = user_tab.at[:NUM_USERS, :H].set(user_fc1)
    user_tab = user_tab.at[:NUM_USERS, BIAS_LANE].set(1.0)   # ones lane -> carries b2

    like_tab = jnp.zeros((N_LIKES_PAD, H_PAD), jnp.float32)
    like_tab = like_tab.at[:NUM_LIKES, :H].set(like_fc1)

    w2_row = jnp.zeros((1, H_PAD), jnp.float32)
    w2_row = w2_row.at[0, :H].set(params["fc2_w"][0])
    w2_row = w2_row.at[0, BIAS_LANE].set(params["fc2_b"][0])  # folds b2

    return {"user_fc1_tab": user_tab, "like_fc1_tab": like_tab, "w2_row": w2_row}


@jax.jit
def collab_filter_forward(u_idx, v_idx, packed):
    B = u_idx.shape[0]
    Bp = _round_up(B, B_BLOCK)
    u2 = jnp.zeros((Bp, 1), jnp.int32).at[:B, 0].set(u_idx.astype(jnp.int32))
    v2 = jnp.zeros((Bp, 1), jnp.int32).at[:B, 0].set(v_idx.astype(jnp.int32))

    out_slab = pl.pallas_call(
        _collab_fused_kernel,
        out_shape=jax.ShapeDtypeStruct((Bp, H_PAD), jnp.float32),
        grid_spec=pltpu.PrefetchScalarGridSpec(
            num_scalar_prefetch=0,
            grid=(Bp // B_BLOCK,),
            in_specs=[
                pl.BlockSpec((B_BLOCK, 1), lambda i: (i, 0)),            # u idx
                pl.BlockSpec((B_BLOCK, 1), lambda i: (i, 0)),            # v idx
                pl.BlockSpec((N_USERS_PAD, H_PAD), lambda i: (0, 0)),    # resident
                pl.BlockSpec((N_LIKES_PAD, H_PAD), lambda i: (0, 0)),    # resident
                pl.BlockSpec((1, H_PAD), lambda i: (0, 0)),              # resident
            ],
            out_specs=pl.BlockSpec((B_BLOCK, H_PAD), lambda i: (i, 0)),
        ),
        compiler_params=pltpu.CompilerParams(
            dimension_semantics=("parallel",)),   # shards B-blocks across v7x TCs
    )(u2, v2, packed["user_fc1_tab"], packed["like_fc1_tab"], packed["w2_row"])

    # Lane 0 of the lane-dense slab is the (B, 1) result; the slice lives inside
    # this jit so it does not cost a second dispatch.
    return out_slab[:B, :1]


def _reference_forward(u_idx, v_idx, params):
    """Pure-JAX reference mirroring the PyTorch forward (eval mode)."""
    hp = jax.lax.Precision.HIGHEST
    U = jnp.take(params["user_emb"], u_idx, axis=0)
    V = jnp.take(params["like_emb"], v_idx, axis=0)
    out = jax.nn.relu(jnp.concatenate([U, V], axis=1))
    out = jax.nn.relu(jnp.dot(out, params["fc1_w"].T, precision=hp) + params["fc1_b"])
    out = jnp.dot(out, params["fc2_w"].T, precision=hp) + params["fc2_b"]
    return out


if __name__ == "__main__":
    key = jax.random.PRNGKey(0)
    pkey, ukey, vkey = jax.random.split(key, 3)

    params = init_params(pkey)
    packed = prepack_params(params)   # one-time re-layout + fc1 folding, NOT per-call

    u = jax.random.randint(ukey, (BATCH,), 0, NUM_USERS, dtype=jnp.int32)
    v = jax.random.randint(vkey, (BATCH,), 0, NUM_LIKES, dtype=jnp.int32)

    out = collab_filter_forward(u, v, packed)
    jax.block_until_ready(out)

    ref = _reference_forward(u, v, params)
    assert out.shape == (BATCH, 1), out.shape
    assert jnp.allclose(out, ref, atol=2e-5, rtol=2e-5), (out, ref)

    print("KERNEL_OK")
</pallas_src>

<mosaic_0001>
module attributes {stable_mosaic.version = 11 : i64} {
  func.func @_collab_fused_kernel(%arg0: i32, %arg1: memref<8x1xi32, #tpu.memory_space<vmem>>, %arg2: memref<8x1xi32, #tpu.memory_space<vmem>>, %arg3: memref<128x128xf32, #tpu.memory_space<vmem>>, %arg4: memref<128x128xf32, #tpu.memory_space<vmem>>, %arg5: memref<1x128xf32, #tpu.memory_space<vmem>>, %arg6: memref<8x128xf32, #tpu.memory_space<vmem>>) attributes {dimension_semantics = [#tpu.dimension_semantics<parallel>], iteration_bounds = array<i64: 1>, scalar_prefetch = 0 : i64, scratch_operands = 0 : i64, tpu.core_type = #tpu.core_type<tc>, window_params = [{transform_indices = @transform_0, window_bounds = array<i64: 8, 1>}, {transform_indices = @transform_1, window_bounds = array<i64: 8, 1>}, {pipeline_mode = #tpu.pipeline_mode<synchronous>, transform_indices = @transform_2, window_bounds = array<i64: 128, 128>}, {pipeline_mode = #tpu.pipeline_mode<synchronous>, transform_indices = @transform_3, window_bounds = array<i64: 128, 128>}, {pipeline_mode = #tpu.pipeline_mode<synchronous>, transform_indices = @transform_4, window_bounds = array<i64: 1, 128>}, {transform_indices = @transform_5, window_bounds = array<i64: 8, 128>}]} {
    %c0 = arith.constant 0 : index
    %c0_0 = arith.constant 0 : index
    %0 = vector.load %arg1[%c0, %c0_0] : memref<8x1xi32, #tpu.memory_space<vmem>>, vector<8x1xi32>
    %c0_1 = arith.constant 0 : index
    %c0_2 = arith.constant 0 : index
    %1 = vector.load %arg2[%c0_1, %c0_2] : memref<8x1xi32, #tpu.memory_space<vmem>>, vector<8x1xi32>
    %2 = tpu.iota {dimensions = array<i32: 1>} : vector<8x128xi32>
    %3 = tpu.iota {dimensions = array<i32: 1>} : vector<8x128xi32>
    %4 = vector.broadcast %0 : vector<8x1xi32> to vector<8x128xi32>
    %5 = arith.cmpi eq, %2, %4 : vector<8x128xi32>
    %6 = arith.extui %5 : vector<8x128xi1> to vector<8x128xi32>
    %7 = arith.sitofp %6 : vector<8x128xi32> to vector<8x128xf32>
    %8 = vector.broadcast %1 : vector<8x1xi32> to vector<8x128xi32>
    %9 = arith.cmpi eq, %3, %8 : vector<8x128xi32>
    %10 = arith.extui %9 : vector<8x128xi1> to vector<8x128xi32>
    %11 = arith.sitofp %10 : vector<8x128xi32> to vector<8x128xf32>
    %c0_3 = arith.constant 0 : index
    %c0_4 = arith.constant 0 : index
    %12 = vector.load %arg3[%c0_3, %c0_4] : memref<128x128xf32, #tpu.memory_space<vmem>>, vector<128x128xf32>
    %cst = arith.constant dense<0.000000e+00> : vector<8x128xf32>
    %13 = tpu.matmul %7, %12, %cst {dimension_numbers = #tpu.dot_dimension_numbers<[1], [0], [0], [1], [0, 0, 1, 1], [], []>} : vector<8x128xf32>, vector<128x128xf32>, vector<8x128xf32> -> vector<8x128xf32>
    %c0_5 = arith.constant 0 : index
    %c0_6 = arith.constant 0 : index
    %14 = vector.load %arg4[%c0_5, %c0_6] : memref<128x128xf32, #tpu.memory_space<vmem>>, vector<128x128xf32>
    %cst_7 = arith.constant dense<0.000000e+00> : vector<8x128xf32>
    %15 = tpu.matmul %11, %14, %cst_7 {dimension_numbers = #tpu.dot_dimension_numbers<[1], [0], [0], [1], [0, 0, 1, 1], [], []>} : vector<8x128xf32>, vector<128x128xf32>, vector<8x128xf32> -> vector<8x128xf32>
    %16 = arith.addf %13, %15 : vector<8x128xf32>
    %cst_8 = arith.constant 0.000000e+00 : f32
    %17 = vector.broadcast %cst_8 : f32 to vector<8x128xf32>
    %18 = arith.maximumf %16, %17 : vector<8x128xf32>
    %c0_9 = arith.constant 0 : index
    %c0_10 = arith.constant 0 : index
    %19 = vector.load %arg5[%c0_9, %c0_10] : memref<1x128xf32, #tpu.memory_space<vmem>>, vector<1x128xf32>
    %20 = vector.broadcast %19 : vector<1x128xf32> to vector<8x128xf32>
    %21 = arith.mulf %18, %20 : vector<8x128xf32>
    %cst_11 = arith.constant dense<0.000000e+00> : vector<8xf32>
    %22 = vector.multi_reduction <add>, %21, %cst_11 [1] : vector<8x128xf32> to vector<8xf32>
    %23 = vector.shape_cast %22 : vector<8xf32> to vector<8x1xf32>
    %24 = vector.shape_cast %23 : vector<8x1xf32> to vector<8x1xf32>
    %25 = vector.broadcast %24 : vector<8x1xf32> to vector<8x128xf32>
    %c0_12 = arith.constant 0 : index
    %c0_13 = arith.constant 0 : index
    %26 = vector.load %arg6[%c0_12, %c0_13] : memref<8x128xf32, #tpu.memory_space<vmem>>, vector<8x128xf32>
    tpu.vector_store %arg6[%c0_12, %c0_13], %25 {strides = array<i32>} : memref<8x128xf32, #tpu.memory_space<vmem>>, vector<8x128xf32>,
    return
  }
  func.func @transform_0(%arg0: i32) -> (i32, i32) {
    %c0_i32 = arith.constant 0 : i32
    %c0_i32_0 = arith.constant 0 : i32
    return %arg0, %c0_i32 : i32, i32
  }
  func.func @transform_1(%arg0: i32) -> (i32, i32) {
    %c0_i32 = arith.constant 0 : i32
    %c0_i32_0 = arith.constant 0 : i32
    return %arg0, %c0_i32 : i32, i32
  }
  func.func @transform_2(%arg0: i32) -> (i32, i32) {
    %c0_i32 = arith.constant 0 : i32
    %c0_i32_0 = arith.constant 0 : i32
    %c0_i32_1 = arith.constant 0 : i32
    return %c0_i32, %c0_i32_0 : i32, i32
  }
  func.func @transform_3(%arg0: i32) -> (i32, i32) {
    %c0_i32 = arith.constant 0 : i32
    %c0_i32_0 = arith.constant 0 : i32
    %c0_i32_1 = arith.constant 0 : i32
    return %c0_i32, %c0_i32_0 : i32, i32
  }
  func.func @transform_4(%arg0: i32) -> (i32, i32) {
    %c0_i32 = arith.constant 0 : i32
    %c0_i32_0 = arith.constant 0 : i32
    %c0_i32_1 = arith.constant 0 : i32
    return %c0_i32, %c0_i32_0 : i32, i32
  }
  func.func @transform_5(%arg0: i32) -> (i32, i32) {
    %c0_i32 = arith.constant 0 : i32
    %c0_i32_0 = arith.constant 0 : i32
    return %arg0, %c0_i32 : i32, i32
  }
}

</mosaic_0001>

<llo_original>
// kernel: collab_filter_forward.1
$region0: #{collab_filter_forward.1}
  #allocation0 [shape = 'u32[]', space=smem, size = 0x4, offset = 0x4, fixed_abs, tag = 'smem constant byte address 0x4 - core index']
  #allocation1 [shape = 'u32[144,128]{1,0:T(1,128)}', space=vmem, size = 0x12000, scoped, tag = 'internal scratch']
  %s0 = inlined_call_operand.vmem [shape: s32[8,1], index: 0, kind: input, shape index: {}]
  %s1 = inlined_call_operand.vmem [shape: s32[8,1], index: 1, kind: input, shape index: {}]
  %s2 = inlined_call_operand.hbm [shape: f32[128,128], index: 2, kind: input, shape index: {}]
  %s3 = inlined_call_operand.hbm [shape: f32[128,128], index: 3, kind: input, shape index: {}]
  %s4 = inlined_call_operand.vmem [shape: f32[1,128], index: 4, kind: input, shape index: {}]
  %s5 = inlined_call_operand.vmem [shape: f32[8,128], index: 5, kind: output, shape index: {}]
  %s6 = sld [smem:[#allocation0]]
  $region38: #{collab_filter_forward.1} parent=0
    _
  %s8 = ssub.s32 1, %s6
  %s9 = scalar_select 0, %s8, %s6
  $region1: #{collab_filter_forward.1} parent=0
    #allocation2 [shape = 'u8[65536]{0}', space=vmem, size = 0x10000, scoped, tag = 'input window, operand 2, single buffered']
    #allocation3 [shape = 's32[1]{0}', space=sflag, size = 0x4, scoped, tag = 'scoped memory for collab_filter_forward.1']
    #allocation4 [shape = 'u8[65536]{0}', space=vmem, size = 0x10000, scoped, tag = 'input window, operand 3, single buffered']
    #allocation5 [shape = 's32[1]{0}', space=sflag, size = 0x4, scoped, tag = 'scoped memory for collab_filter_forward.1']
    %10 = vsyncpa [#allocation3], 0
    %11 = vsyncpa [#allocation5], 0
    // Predicated region
    $region2: #{collab_filter_forward.1} parent=1 // pred_check
      _
    $region3: #{collab_filter_forward.1} parent=1 // pred_check_branch
      %13 = sbr.rel (0) target = $region5
    $region4: #{collab_filter_forward.1} parent=1 // pred_region
      _
    $region5: #{collab_filter_forward.1} parent=1 // pred_fallthru
      _
    // Predicated region
    $region6: #{collab_filter_forward.1} parent=1 // pred_check
      _
    $region7: #{collab_filter_forward.1} parent=1 // pred_check_branch
      %15 = sbr.rel (0) target = $region9
    $region8: #{collab_filter_forward.1} parent=1 // pred_region
      _
    $region9: #{collab_filter_forward.1} parent=1 // pred_fallthru
      _
    // Predicated region
    $region10: #{collab_filter_forward.1} parent=1 // pred_check
      _
    $region11: #{collab_filter_forward.1} parent=1 // pred_check_branch
      %17 = sbr.rel (0) target = $region13
    $region12: #{collab_filter_forward.1} parent=1 // pred_region
      %s19 = ssub.s32 2048, 2048
      %20 = vsyncadd [#allocation3], %s19
      %s21 = sshll.u32 [#allocation2], 4
      %s22 = int_to_ptr.vmem [resolvable:$true] %s21
      %27 = dma.hbm_to_vmem [thread:$0]  %s2, 2048, %s22, [#allocation3], 128, 128, 8
    $region13: #{collab_filter_forward.1} parent=1 // pred_fallthru
      _
    // Predicated region
    $region14: #{collab_filter_forward.1} parent=1 // pred_check
      _
    $region15: #{collab_filter_forward.1} parent=1 // pred_check_branch
      %29 = sbr.rel (0) target = $region17
    $region16: #{collab_filter_forward.1} parent=1 // pred_region
      %s31 = ssub.s32 2048, 2048
      %32 = vsyncadd [#allocation5], %s31
      %s33 = sshll.u32 [#allocation4], 4
      %s34 = int_to_ptr.vmem [resolvable:$true] %s33
      %39 = dma.hbm_to_vmem [thread:$0]  %s3, 2048, %s34, [#allocation5], 128, 128, 8
    $region17: #{collab_filter_forward.1} parent=1 // pred_fallthru
      _
    // Predicated region
    $region18: #{collab_filter_forward.1} parent=1 // pred_check
      _
    $region19: #{collab_filter_forward.1} parent=1 // pred_check_branch
      %41 = sbr.rel (0) target = $region21
    $region20: #{collab_filter_forward.1} parent=1 // pred_region
      _
    $region21: #{collab_filter_forward.1} parent=1 // pred_fallthru
      _
    // Predicated region
    $region22: #{collab_filter_forward.1} parent=1 // pred_check
      _
    $region23: #{collab_filter_forward.1} parent=1 // pred_check_branch
      %43 = sbr.rel (0) target = $region25
    $region24: #{collab_filter_forward.1} parent=1 // pred_region
      %44 = dma.done [#allocation3], 2048
    $region25: #{collab_filter_forward.1} parent=1 // pred_fallthru
      _
    // Predicated region
    $region26: #{collab_filter_forward.1} parent=1 // pred_check
      _
    $region27: #{collab_filter_forward.1} parent=1 // pred_check_branch
      %46 = sbr.rel (0) target = $region29
    $region28: #{collab_filter_forward.1} parent=1 // pred_region
      %47 = dma.done [#allocation5], 2048
    $region29: #{collab_filter_forward.1} parent=1 // pred_fallthru
      _
    %v48 = vld [vmem:[%s0] sm:$0xff]
    %v49 = vld [vmem:[%s1] sm:$0xff]
    %v50 = vlaneseq
    %v51 = vand.u32 %v50, 127
    %52 = vset.pattern.permute.xlu0 0
    %53 = vperm.xlu0 %52, %v48
    %v54 = vpop.permute.xlu0 %53
    %vm55 = vcmp.eq.s32.totalorder %v51, %v54
    %v56 = vsel %vm55, 1, 0
    %v57 = vcvt.s32.f32 %v56
    %58 = vset.pattern.permute.xlu0 0
    %59 = vperm.xlu0 %58, %v49
    %v60 = vpop.permute.xlu0 %59
    %vm61 = vcmp.eq.s32.totalorder %v51, %v60
    %v62 = vsel %vm61, 1, 0
    %v63 = vcvt.s32.f32 %v62
    %v64 = vld [vmem:[#allocation2] sm:$0xff]
    %v65 = vld [vmem:[#allocation2 + $0x8] sm:$0xff]
    %v66 = vld [vmem:[#allocation2 + $0x10] sm:$0xff]
    %v67 = vld [vmem:[#allocation2 + $0x18] sm:$0xff]
    %v68 = vld [vmem:[#allocation2 + $0x20] sm:$0xff]
    %v69 = vld [vmem:[#allocation2 + $0x28] sm:$0xff]
    %v70 = vld [vmem:[#allocation2 + $0x30] sm:$0xff]
    %v71 = vld [vmem:[#allocation2 + $0x38] sm:$0xff]
    %v72 = vld [vmem:[#allocation2 + $0x40] sm:$0xff]
    %v73 = vld [vmem:[#allocation2 + $0x48] sm:$0xff]
    %v74 = vld [vmem:[#allocation2 + $0x50] sm:$0xff]
    %v75 = vld [vmem:[#allocation2 + $0x58] sm:$0xff]
    %v76 = vld [vmem:[#allocation2 + $0x60] sm:$0xff]
    %v77 = vld [vmem:[#allocation2 + $0x68] sm:$0xff]
    %v78 = vld [vmem:[#allocation2 + $0x70] sm:$0xff]
    %v79 = vld [vmem:[#allocation2 + $0x78] sm:$0xff]
    %v80 = vld [vmem:[#allocation4] sm:$0xff]
    %v81 = vld [vmem:[#allocation4 + $0x8] sm:$0xff]
    %v82 = vld [vmem:[#allocation4 + $0x10] sm:$0xff]
    %v83 = vld [vmem:[#allocation4 + $0x18] sm:$0xff]
    %v84 = vld [vmem:[#allocation4 + $0x20] sm:$0xff]
    %v85 = vld [vmem:[#allocation4 + $0x28] sm:$0xff]
    %v86 = vld [vmem:[#allocation4 + $0x30] sm:$0xff]
    %v87 = vld [vmem:[#allocation4 + $0x38] sm:$0xff]
    %v88 = vld [vmem:[#allocation4 + $0x40] sm:$0xff]
    %v89 = vld [vmem:[#allocation4 + $0x48] sm:$0xff]
    %v90 = vld [vmem:[#allocation4 + $0x50] sm:$0xff]
    %v91 = vld [vmem:[#allocation4 + $0x58] sm:$0xff]
    %v92 = vld [vmem:[#allocation4 + $0x60] sm:$0xff]
    %v93 = vld [vmem:[#allocation4 + $0x68] sm:$0xff]
    %v94 = vld [vmem:[#allocation4 + $0x70] sm:$0xff]
    %v95 = vld [vmem:[#allocation4 + $0x78] sm:$0xff]
    %96 = vmatprep.subr.mxu0 0.0
    %97 = vmatpush1.msra.mxu0 %v95
    %98 = vmatprep.subr.mxu0 0.0
    %99 = vmatpush1.msra.mxu0 %v94
    %100 = vmatprep.subr.mxu0 0.0
    %101 = vmatpush1.msra.mxu0 %v93
    %102 = vmatprep.subr.mxu0 0.0
    %103 = vmatpush1.msra.mxu0 %v92
    %104 = vmatprep.subr.mxu0 0.0
    %105 = vmatpush1.msra.mxu0 %v91
    %106 = vmatprep.subr.mxu0 0.0
    %107 = vmatpush1.msra.mxu0 %v90
    %108 = vmatprep.subr.mxu0 0.0
    %109 = vmatpush1.msra.mxu0 %v89
    %110 = vmatprep.subr.mxu0 0.0
    %111 = vmatpush1.msra.mxu0 %v88
    %112 = vmatprep.subr.mxu0 0.0
    %113 = vmatpush1.msra.mxu0 %v87
    %114 = vmatprep.subr.mxu0 0.0
    %115 = vmatpush1.msra.mxu0 %v86
    %116 = vmatprep.subr.mxu0 0.0
    %117 = vmatpush1.msra.mxu0 %v85
    %118 = vmatprep.subr.mxu0 0.0
    %119 = vmatpush1.msra.mxu0 %v84
    %120 = vmatprep.subr.mxu0 0.0
    %121 = vmatpush1.msra.mxu0 %v83
    %122 = vmatprep.subr.mxu0 0.0
    %123 = vmatpush1.msra.mxu0 %v82
    %124 = vmatprep.subr.mxu0 0.0
    %125 = vmatpush1.msra.mxu0 %v81
    %126 = vmatprep.subr.mxu0 0.0
    %127 = vmatpush1.msra.mxu0 %v80
    %128 = vmatprep.subr.mxu0 0.0
    %129 = vmatpush2.msra.mxu0 0.0
    %130 = vmatprep.subr.mxu0 0.0
    %131 = vmatpush2.msra.mxu0 0.0
    %132 = vmatprep.subr.mxu0 0.0
    %133 = vmatpush2.msra.mxu0 0.0
    %134 = vmatprep.subr.mxu0 0.0
    %135 = vmatpush2.msra.mxu0 0.0
    %136 = vmatprep.subr.mxu0 0.0
    %137 = vmatpush2.msra.mxu0 0.0
    %138 = vmatprep.subr.mxu0 0.0
    %139 = vmatpush2.msra.mxu0 0.0
    %140 = vmatprep.subr.mxu0 0.0
    %141 = vmatpush2.msra.mxu0 0.0
    %142 = vmatprep.subr.mxu0 0.0
    %143 = vmatpush2.msra.mxu0 0.0
    %144 = vmatprep.subr.mxu0 0.0
    %145 = vmatpush2.msra.mxu0 0.0
    %146 = vmatprep.subr.mxu0 0.0
    %147 = vmatpush2.msra.mxu0 0.0
    %148 = vmatprep.subr.mxu0 0.0
    %149 = vmatpush2.msra.mxu0 0.0
    %150 = vmatprep.subr.mxu0 0.0
    %151 = vmatpush2.msra.mxu0 0.0
    %152 = vmatprep.subr.mxu0 0.0
    %153 = vmatpush2.msra.mxu0 0.0
    %154 = vmatprep.subr.mxu0 0.0
    %155 = vmatpush2.msra.mxu0 0.0
    %156 = vmatprep.subr.mxu0 0.0
    %157 = vmatpush2.msra.mxu0 0.0
    %158 = vmatprep.subr.mxu0 0.0
    %159 = vmatpush2.msra.mxu0 0.0
    %160 = vmatprep.mubr.f32.mxu0 0.0
    %161 = vmatmul.mubr.f32.gmra.mxu0 %v63
    %v162 = vpop.f32.mrf.mxu0
    %v163 = vadd.f32 0.0, %v162
    %v164 = vpop.f32.mrf.mxu0
    %165 = vdwg.mxu0
    %166 = vmatprep.subr.mxu0 0.0
    %167 = vmatpush1.msra.mxu0 %v79
    %168 = vmatprep.subr.mxu0 0.0
    %169 = vmatpush1.msra.mxu0 %v78
    %170 = vmatprep.subr.mxu0 0.0
    %171 = vmatpush1.msra.mxu0 %v77
    %172 = vmatprep.subr.mxu0 0.0
    %173 = vmatpush1.msra.mxu0 %v76
    %174 = vmatprep.subr.mxu0 0.0
    %175 = vmatpush1.msra.mxu0 %v75
    %176 = vmatprep.subr.mxu0 0.0
    %177 = vmatpush1.msra.mxu0 %v74
    %178 = vmatprep.subr.mxu0 0.0
    %179 = vmatpush1.msra.mxu0 %v73
    %180 = vmatprep.subr.mxu0 0.0
    %181 = vmatpush1.msra.mxu0 %v72
    %182 = vmatprep.subr.mxu0 0.0
    %183 = vmatpush1.msra.mxu0 %v71
    %184 = vmatprep.subr.mxu0 0.0
    %185 = vmatpush1.msra.mxu0 %v70
    %186 = vmatprep.subr.mxu0 0.0
    %187 = vmatpush1.msra.mxu0 %v69
    %188 = vmatprep.subr.mxu0 0.0
    %189 = vmatpush1.msra.mxu0 %v68
    %190 = vmatprep.subr.mxu0 0.0
    %191 = vmatpush1.msra.mxu0 %v67
    %192 = vmatprep.subr.mxu0 0.0
    %193 = vmatpush1.msra.mxu0 %v66
    %194 = vmatprep.subr.mxu0 0.0
    %195 = vmatpush1.msra.mxu0 %v65
    %196 = vmatprep.subr.mxu0 0.0
    %197 = vmatpush1.msra.mxu0 %v64
    %198 = vmatprep.subr.mxu0 0.0
    %199 = vmatpush2.msra.mxu0 0.0
    %200 = vmatprep.subr.mxu0 0.0
    %201 = vmatpush2.msra.mxu0 0.0
    %202 = vmatprep.subr.mxu0 0.0
    %203 = vmatpush2.msra.mxu0 0.0
    %204 = vmatprep.subr.mxu0 0.0
    %205 = vmatpush2.msra.mxu0 0.0
    %206 = vmatprep.subr.mxu0 0.0
    %207 = vmatpush2.msra.mxu0 0.0
    %208 = vmatprep.subr.mxu0 0.0
    %209 = vmatpush2.msra.mxu0 0.0
    %210 = vmatprep.subr.mxu0 0.0
    %211 = vmatpush2.msra.mxu0 0.0
    %212 = vmatprep.subr.mxu0 0.0
    %213 = vmatpush2.msra.mxu0 0.0
    %214 = vmatprep.subr.mxu0 0.0
    %215 = vmatpush2.msra.mxu0 0.0
    %216 = vmatprep.subr.mxu0 0.0
    %217 = vmatpush2.msra.mxu0 0.0
    %218 = vmatprep.subr.mxu0 0.0
    %219 = vmatpush2.msra.mxu0 0.0
    %220 = vmatprep.subr.mxu0 0.0
    %221 = vmatpush2.msra.mxu0 0.0
    %222 = vmatprep.subr.mxu0 0.0
    %223 = vmatpush2.msra.mxu0 0.0
    %224 = vmatprep.subr.mxu0 0.0
    %225 = vmatpush2.msra.mxu0 0.0
    %226 = vmatprep.subr.mxu0 0.0
    %227 = vmatpush2.msra.mxu0 0.0
    %228 = vmatprep.subr.mxu0 0.0
    %229 = vmatpush2.msra.mxu0 0.0
    %230 = vmatprep.mubr.f32.mxu0 0.0
    %231 = vmatmul.mubr.f32.gmra.mxu0 %v57
    %v232 = vpop.f32.mrf.mxu0
    %v233 = vadd.f32 %v163, %v232
    %v234 = vpop.f32.mrf.mxu0
    %235 = vdwg.mxu0
    %v236 = vmax.f32 %v233, 0.0
    %v237 = vld [vmem:[%s4] sm:$0x1]
    %v239 = vlaneseq
    %v240 = vshrl.u32 %v239, 7
    %v241 = vsub.s32 0, %v240
    %v242 = vrot.slane %v237, %v241
    %v244 = vmul.f32 %v236, %v242
    %245 = vadd.xlane.f32.xlu0 %v244
    %v246 = vpop.xlane.xlu0 %245
    %247 = vst [vmem:[%s5] sm:$0xff] %v246
    // Predicated region
    $region30: #{collab_filter_forward.1} parent=1 // pred_check
      _
    $region31: #{collab_filter_forward.1} parent=1 // pred_check_branch
      %249 = sbr.rel (0) target = $region33
    $region32: #{collab_filter_forward.1} parent=1 // pred_region
      _
    $region33: #{collab_filter_forward.1} parent=1 // pred_fallthru
      _
    // Predicated region
    $region34: #{collab_filter_forward.1} parent=1 // pred_check
      _
    $region35: #{collab_filter_forward.1} parent=1 // pred_check_branch
      %251 = sbr.rel (0) target = $region37
    $region36: #{collab_filter_forward.1} parent=1 // pred_region
      _
    $region37: #{collab_filter_forward.1} parent=1 // pred_fallthru
      _
    %252 = vsyncpa [#allocation3], 1
    %253 = vsyncpa [#allocation5], 1

</llo_original>
